<compile_context>
chip_gen: v7x
topology: tpu7x:2x2x1
jax: 0.10.0
libtpu: 0.0.40
codegen_flags: <defaults>
</compile_context>

<pallas_src>
import jax
import jax.numpy as jnp
from jax.experimental import pallas as pl
from jax.experimental.pallas import tpu as pltpu


def aggregate_kernel(va_ref, vb_ref, w1a_ref, w1b_ref, b1_ref,
                     w2_ref, b2_ref, w3_ref, b3_ref, out_ref):
    # Sum over the sequence axis (dim=1). Sublane/XLU reduction is effectively
    # free under the DMA bottleneck -- no need to push it to the MXU.
    sa = jnp.sum(va_ref[...], axis=1)                     # (TB, H)
    sb = jnp.sum(vb_ref[...], axis=1)                     # (TB, H)

    # First Linear(2H -> H) without the lane-axis concat:
    # concat([sa, sb]) @ W1  ==  sa @ W1[:H] + sb @ W1[H:]
    h1 = jnp.dot(sa, w1a_ref[...], preferred_element_type=jnp.float32)
    h1 = h1 + jnp.dot(sb, w1b_ref[...], preferred_element_type=jnp.float32)
    h1 = jnp.maximum(h1 + b1_ref[...], 0.0)               # ReLU

    # Second Linear(H -> H) + ReLU (dropout is identity in eval mode).
    h2 = jnp.dot(h1, w2_ref[...], preferred_element_type=jnp.float32)
    h2 = jnp.maximum(h2 + b2_ref[...], 0.0)

    # Final classifier, computed into a lane-dense (TB, 128) padded output.
    y = jnp.dot(h2, w3_ref[...], preferred_element_type=jnp.float32) + b3_ref[...]
    out_ref[...] = y.astype(out_ref.dtype)


def _round_up(x, m):
    return ((x + m - 1) // m) * m


def _choose_batch_tile(batch, seq, hidden, budget_bytes=16 * 1024 * 1024):
    """Batch tile (multiple of 8) whose double-buffered footprint fits budget.

    Per batch row we stream: 2 inputs x 2 pipeline buffers x seq*hidden f32,
    plus the (padded, 128-lane) output double buffer.  Budget is kept well
    under the 32 MiB scoped VMEM default so it is safe on v5e/v6e/v7x alike.
    """
    per_row = 2 * 2 * seq * hidden * 4 + 2 * 128 * 4
    tb = budget_bytes // max(per_row, 1)
    tb = max(8, (tb // 8) * 8)
    tb = min(tb, 512)                         # diminishing returns past ~512
    tb = min(tb, _round_up(batch, 8))         # don't exceed (padded) batch
    return tb


def aggregate_forward(v_a, v_b, w1, b1, w2, b2, w3, b3):
    """v_a, v_b: (B, T, H) float32. Returns (B, num_outputs) float32."""
    B, T, H = v_a.shape
    num_outputs = w3.shape[1]

    # Split W1 into its V_A / V_B halves (static, zero-cost at trace time).
    w1a = w1[:H, :]
    w1b = w1[H:, :]

    # Pad classifier to a lane-dense 128-wide output (zero weight/bias in the
    # padded columns -> identical numerics in the first num_outputs columns).
    n_pad = _round_up(num_outputs, 128)
    w3p = jnp.zeros((H, n_pad), w3.dtype).at[:, :num_outputs].set(w3)
    b3p = jnp.zeros((1, n_pad), b3.dtype).at[:, :num_outputs].set(b3)

    # Batch tile + pad batch so every grid block is full.
    TB = _choose_batch_tile(B, T, H)
    Bp = _round_up(B, TB)
    if Bp != B:
        pad = Bp - B
        v_a = jnp.pad(v_a, ((0, pad), (0, 0), (0, 0)))
        v_b = jnp.pad(v_b, ((0, pad), (0, 0), (0, 0)))

    grid = (Bp // TB,)
    resident = lambda i: (0, 0)               # weights/biases: DMA'd once

    out = pl.pallas_call(
        aggregate_kernel,
        out_shape=jax.ShapeDtypeStruct((Bp, n_pad), jnp.float32),
        grid=grid,
        in_specs=[
            pl.BlockSpec((TB, T, H), lambda i: (i, 0, 0)),   # V_A tile
            pl.BlockSpec((TB, T, H), lambda i: (i, 0, 0)),   # V_B tile
            pl.BlockSpec((H, H), resident),                  # W1[:H]
            pl.BlockSpec((H, H), resident),                  # W1[H:]
            pl.BlockSpec((1, H), resident),                  # b1
            pl.BlockSpec((H, H), resident),                  # W2
            pl.BlockSpec((1, H), resident),                  # b2
            pl.BlockSpec((H, n_pad), resident),              # W3 (lane-padded)
            pl.BlockSpec((1, n_pad), resident),              # b3 (lane-padded)
        ],
        out_specs=pl.BlockSpec((TB, n_pad), lambda i: (i, 0)),
        compiler_params=pltpu.CompilerParams(
            dimension_semantics=("parallel",),               # megacore on v7x
            vmem_limit_bytes=32 * 1024 * 1024,
        ),
    )(v_a, v_b, w1a, w1b, b1, w2, b2, w3p, b3p)

    # TODO(synk): for very large T, add a trailing "arbitrary" sequence grid
    # axis and accumulate sa/sb into VMEM scratch to cap per-step footprint.
    return out[:B, :num_outputs]


def init_params(key, num_inputs, num_hiddens, num_outputs):
    """Deterministic synthetic parameters.  Weights stored as (in, out)."""
    k1, k2, k3, k4, k5, k6 = jax.random.split(key, 6)
    w1 = jax.random.normal(k1, (num_inputs, num_hiddens), jnp.float32) * 0.1
    b1 = jax.random.normal(k2, (1, num_hiddens), jnp.float32) * 0.1
    w2 = jax.random.normal(k3, (num_hiddens, num_hiddens), jnp.float32) * 0.1
    b2 = jax.random.normal(k4, (1, num_hiddens), jnp.float32) * 0.1
    w3 = jax.random.normal(k5, (num_hiddens, num_outputs), jnp.float32) * 0.1
    b3 = jax.random.normal(k6, (1, num_outputs), jnp.float32) * 0.1
    return w1, b1, w2, b2, w3, b3


def aggregate_reference(v_a, v_b, w1, b1, w2, b2, w3, b3):
    sa = v_a.sum(axis=1)
    sb = v_b.sum(axis=1)
    x = jnp.concatenate([sa, sb], axis=1)
    h1 = jnp.maximum(x @ w1 + b1, 0.0)
    h2 = jnp.maximum(h1 @ w2 + b2, 0.0)
    return h2 @ w3 + b3


if __name__ == "__main__":
    # Small shapes consistent with the module: V_A, V_B come out of Compare
    # with shape (batch, seq, num_hiddens); the aggregate MLP input width is
    # 2 * num_hiddens.
    batch, seq, num_hiddens, num_outputs = 2, 8, 32, 3
    num_inputs_agg = 2 * num_hiddens

    key = jax.random.PRNGKey(0)
    k_va, k_vb, k_params = jax.random.split(key, 3)
    v_a = jax.random.normal(k_va, (batch, seq, num_hiddens), jnp.float32)
    v_b = jax.random.normal(k_vb, (batch, seq, num_hiddens), jnp.float32)
    params = init_params(k_params, num_inputs_agg, num_hiddens, num_outputs)

    y = aggregate_forward(v_a, v_b, *params)
    y = jax.block_until_ready(y)

    y_ref = aggregate_reference(v_a, v_b, *params)
    assert y.shape == (batch, num_outputs)
    assert jnp.allclose(y, y_ref, atol=1e-5, rtol=1e-5), "mismatch vs reference"

    print("KERNEL_OK")
</pallas_src>

<mosaic_0001>
module attributes {stable_mosaic.version = 11 : i64} {
  func.func @aggregate_kernel(%arg0: i32, %arg1: memref<8x8x32xf32, #tpu.memory_space<vmem>>, %arg2: memref<8x8x32xf32, #tpu.memory_space<vmem>>, %arg3: memref<32x32xf32, #tpu.memory_space<vmem>>, %arg4: memref<32x32xf32, #tpu.memory_space<vmem>>, %arg5: memref<1x32xf32, #tpu.memory_space<vmem>>, %arg6: memref<32x32xf32, #tpu.memory_space<vmem>>, %arg7: memref<1x32xf32, #tpu.memory_space<vmem>>, %arg8: memref<32x128xf32, #tpu.memory_space<vmem>>, %arg9: memref<1x128xf32, #tpu.memory_space<vmem>>, %arg10: memref<8x128xf32, #tpu.memory_space<vmem>>) attributes {dimension_semantics = [#tpu.dimension_semantics<parallel>], iteration_bounds = array<i64: 1>, scalar_prefetch = 0 : i64, scratch_operands = 0 : i64, tpu.core_type = #tpu.core_type<tc>, window_params = [{transform_indices = @transform_0, window_bounds = array<i64: 8, 8, 32>}, {transform_indices = @transform_1, window_bounds = array<i64: 8, 8, 32>}, {pipeline_mode = #tpu.pipeline_mode<synchronous>, transform_indices = @transform_2, window_bounds = array<i64: 32, 32>}, {pipeline_mode = #tpu.pipeline_mode<synchronous>, transform_indices = @transform_3, window_bounds = array<i64: 32, 32>}, {pipeline_mode = #tpu.pipeline_mode<synchronous>, transform_indices = @transform_4, window_bounds = array<i64: 1, 32>}, {pipeline_mode = #tpu.pipeline_mode<synchronous>, transform_indices = @transform_5, window_bounds = array<i64: 32, 32>}, {pipeline_mode = #tpu.pipeline_mode<synchronous>, transform_indices = @transform_6, window_bounds = array<i64: 1, 32>}, {pipeline_mode = #tpu.pipeline_mode<synchronous>, transform_indices = @transform_7, window_bounds = array<i64: 32, 128>}, {pipeline_mode = #tpu.pipeline_mode<synchronous>, transform_indices = @transform_8, window_bounds = array<i64: 1, 128>}, {transform_indices = @transform_9, window_bounds = array<i64: 8, 128>}]} {
    %c0 = arith.constant 0 : index
    %c0_0 = arith.constant 0 : index
    %c0_1 = arith.constant 0 : index
    %0 = vector.load %arg1[%c0, %c0_0, %c0_1] : memref<8x8x32xf32, #tpu.memory_space<vmem>>, vector<8x8x32xf32>
    %cst = arith.constant dense<0.000000e+00> : vector<8x32xf32>
    %1 = vector.multi_reduction <add>, %0, %cst [1] : vector<8x8x32xf32> to vector<8x32xf32>
    %c0_2 = arith.constant 0 : index
    %c0_3 = arith.constant 0 : index
    %c0_4 = arith.constant 0 : index
    %2 = vector.load %arg2[%c0_2, %c0_3, %c0_4] : memref<8x8x32xf32, #tpu.memory_space<vmem>>, vector<8x8x32xf32>
    %cst_5 = arith.constant dense<0.000000e+00> : vector<8x32xf32>
    %3 = vector.multi_reduction <add>, %2, %cst_5 [1] : vector<8x8x32xf32> to vector<8x32xf32>
    %c0_6 = arith.constant 0 : index
    %c0_7 = arith.constant 0 : index
    %4 = vector.load %arg3[%c0_6, %c0_7] : memref<32x32xf32, #tpu.memory_space<vmem>>, vector<32x32xf32>
    %cst_8 = arith.constant dense<0.000000e+00> : vector<8x32xf32>
    %5 = tpu.matmul %1, %4, %cst_8 {dimension_numbers = #tpu.dot_dimension_numbers<[1], [0], [0], [1], [0, 0, 1, 1], [], []>} : vector<8x32xf32>, vector<32x32xf32>, vector<8x32xf32> -> vector<8x32xf32>
    %c0_9 = arith.constant 0 : index
    %c0_10 = arith.constant 0 : index
    %6 = vector.load %arg4[%c0_9, %c0_10] : memref<32x32xf32, #tpu.memory_space<vmem>>, vector<32x32xf32>
    %cst_11 = arith.constant dense<0.000000e+00> : vector<8x32xf32>
    %7 = tpu.matmul %3, %6, %cst_11 {dimension_numbers = #tpu.dot_dimension_numbers<[1], [0], [0], [1], [0, 0, 1, 1], [], []>} : vector<8x32xf32>, vector<32x32xf32>, vector<8x32xf32> -> vector<8x32xf32>
    %8 = arith.addf %5, %7 : vector<8x32xf32>
    %c0_12 = arith.constant 0 : index
    %c0_13 = arith.constant 0 : index
    %9 = vector.load %arg5[%c0_12, %c0_13] : memref<1x32xf32, #tpu.memory_space<vmem>>, vector<1x32xf32>
    %10 = vector.broadcast %9 : vector<1x32xf32> to vector<8x32xf32>
    %11 = arith.addf %8, %10 : vector<8x32xf32>
    %cst_14 = arith.constant 0.000000e+00 : f32
    %12 = vector.broadcast %cst_14 : f32 to vector<8x32xf32>
    %13 = arith.maximumf %11, %12 : vector<8x32xf32>
    %c0_15 = arith.constant 0 : index
    %c0_16 = arith.constant 0 : index
    %14 = vector.load %arg6[%c0_15, %c0_16] : memref<32x32xf32, #tpu.memory_space<vmem>>, vector<32x32xf32>
    %cst_17 = arith.constant dense<0.000000e+00> : vector<8x32xf32>
    %15 = tpu.matmul %13, %14, %cst_17 {dimension_numbers = #tpu.dot_dimension_numbers<[1], [0], [0], [1], [0, 0, 1, 1], [], []>} : vector<8x32xf32>, vector<32x32xf32>, vector<8x32xf32> -> vector<8x32xf32>
    %c0_18 = arith.constant 0 : index
    %c0_19 = arith.constant 0 : index
    %16 = vector.load %arg7[%c0_18, %c0_19] : memref<1x32xf32, #tpu.memory_space<vmem>>, vector<1x32xf32>
    %17 = vector.broadcast %16 : vector<1x32xf32> to vector<8x32xf32>
    %18 = arith.addf %15, %17 : vector<8x32xf32>
    %cst_20 = arith.constant 0.000000e+00 : f32
    %19 = vector.broadcast %cst_20 : f32 to vector<8x32xf32>
    %20 = arith.maximumf %18, %19 : vector<8x32xf32>
    %c0_21 = arith.constant 0 : index
    %c0_22 = arith.constant 0 : index
    %21 = vector.load %arg8[%c0_21, %c0_22] : memref<32x128xf32, #tpu.memory_space<vmem>>, vector<32x128xf32>
    %cst_23 = arith.constant dense<0.000000e+00> : vector<8x128xf32>
    %22 = tpu.matmul %20, %21, %cst_23 {dimension_numbers = #tpu.dot_dimension_numbers<[1], [0], [0], [1], [0, 0, 1, 1], [], []>} : vector<8x32xf32>, vector<32x128xf32>, vector<8x128xf32> -> vector<8x128xf32>
    %c0_24 = arith.constant 0 : index
    %c0_25 = arith.constant 0 : index
    %23 = vector.load %arg9[%c0_24, %c0_25] : memref<1x128xf32, #tpu.memory_space<vmem>>, vector<1x128xf32>
    %24 = vector.broadcast %23 : vector<1x128xf32> to vector<8x128xf32>
    %25 = arith.addf %22, %24 : vector<8x128xf32>
    %c0_26 = arith.constant 0 : index
    %c0_27 = arith.constant 0 : index
    %26 = vector.load %arg10[%c0_26, %c0_27] : memref<8x128xf32, #tpu.memory_space<vmem>>, vector<8x128xf32>
    tpu.vector_store %arg10[%c0_26, %c0_27], %25 {strides = array<i32>} : memref<8x128xf32, #tpu.memory_space<vmem>>, vector<8x128xf32>,
    return
  }
  func.func @transform_0(%arg0: i32) -> (i32, i32, i32) {
    %c0_i32 = arith.constant 0 : i32
    %c0_i32_0 = arith.constant 0 : i32
    %c0_i32_1 = arith.constant 0 : i32
    return %arg0, %c0_i32, %c0_i32_0 : i32, i32, i32
  }
  func.func @transform_1(%arg0: i32) -> (i32, i32, i32) {
    %c0_i32 = arith.constant 0 : i32
    %c0_i32_0 = arith.constant 0 : i32
    %c0_i32_1 = arith.constant 0 : i32
    return %arg0, %c0_i32, %c0_i32_0 : i32, i32, i32
  }
  func.func @transform_2(%arg0: i32) -> (i32, i32) {
    %c0_i32 = arith.constant 0 : i32
    %c0_i32_0 = arith.constant 0 : i32
    %c0_i32_1 = arith.constant 0 : i32
    return %c0_i32, %c0_i32_0 : i32, i32
  }
  func.func @transform_3(%arg0: i32) -> (i32, i32) {
    %c0_i32 = arith.constant 0 : i32
    %c0_i32_0 = arith.constant 0 : i32
    %c0_i32_1 = arith.constant 0 : i32
    return %c0_i32, %c0_i32_0 : i32, i32
  }
  func.func @transform_4(%arg0: i32) -> (i32, i32) {
    %c0_i32 = arith.constant 0 : i32
    %c0_i32_0 = arith.constant 0 : i32
    %c0_i32_1 = arith.constant 0 : i32
    return %c0_i32, %c0_i32_0 : i32, i32
  }
  func.func @transform_5(%arg0: i32) -> (i32, i32) {
    %c0_i32 = arith.constant 0 : i32
    %c0_i32_0 = arith.constant 0 : i32
    %c0_i32_1 = arith.constant 0 : i32
    return %c0_i32, %c0_i32_0 : i32, i32
  }
  func.func @transform_6(%arg0: i32) -> (i32, i32) {
    %c0_i32 = arith.constant 0 : i32
    %c0_i32_0 = arith.constant 0 : i32
    %c0_i32_1 = arith.constant 0 : i32
    return %c0_i32, %c0_i32_0 : i32, i32
  }
  func.func @transform_7(%arg0: i32) -> (i32, i32) {
    %c0_i32 = arith.constant 0 : i32
    %c0_i32_0 = arith.constant 0 : i32
    %c0_i32_1 = arith.constant 0 : i32
    return %c0_i32, %c0_i32_0 : i32, i32
  }
  func.func @transform_8(%arg0: i32) -> (i32, i32) {
    %c0_i32 = arith.constant 0 : i32
    %c0_i32_0 = arith.constant 0 : i32
    %c0_i32_1 = arith.constant 0 : i32
    return %c0_i32, %c0_i32_0 : i32, i32
  }
  func.func @transform_9(%arg0: i32) -> (i32, i32) {
    %c0_i32 = arith.constant 0 : i32
    %c0_i32_0 = arith.constant 0 : i32
    return %arg0, %c0_i32 : i32, i32
  }
}

</mosaic_0001>

<llo_original>
// kernel: tpu_custom_call.1
$region0: #{tpu_custom_call.1}
  #allocation0 [shape = 'u32[]', space=smem, size = 0x4, offset = 0x4, fixed_abs, tag = 'smem constant byte address 0x4 - core index']
  #allocation1 [shape = 'u32[144,128]{1,0:T(1,128)}', space=vmem, size = 0x12000, scoped, tag = 'internal scratch']
  %s0 = inlined_call_operand.hbm [shape: f32[8,8,32], index: 0, kind: input, shape index: {}]
  %s1 = inlined_call_operand.hbm [shape: f32[8,8,32], index: 1, kind: input, shape index: {}]
  %s2 = inlined_call_operand.hbm [shape: f32[32,32], index: 2, kind: input, shape index: {}]
  %s3 = inlined_call_operand.hbm [shape: f32[32,32], index: 3, kind: input, shape index: {}]
  %s4 = inlined_call_operand.vmem [shape: f32[1,32], index: 4, kind: input, shape index: {}]
  %s5 = inlined_call_operand.hbm [shape: f32[32,32], index: 5, kind: input, shape index: {}]
  %s6 = inlined_call_operand.vmem [shape: f32[1,32], index: 6, kind: input, shape index: {}]
  %s7 = inlined_call_operand.hbm [shape: f32[32,128], index: 7, kind: input, shape index: {}]
  %s8 = inlined_call_operand.vmem [shape: f32[1,128], index: 8, kind: input, shape index: {}]
  %s9 = inlined_call_operand.hbm [shape: f32[8,128], index: 9, kind: output, shape index: {}]
  %s10 = sld [smem:[#allocation0]]
  $region70: #{tpu_custom_call.1} parent=0
    _
  %s12 = ssub.s32 1, %s10
  %s13 = scalar_select 0, %s12, %s10
  $region1: #{tpu_custom_call.1} parent=0
    #allocation2 [shape = 'u8[32768]{0}', space=vmem, size = 0x8000, scoped, tag = 'input window, operand 0, single buffered']
    #allocation3 [shape = 's32[1]{0}', space=sflag, size = 0x4, scoped, tag = 'scoped memory for tpu_custom_call.1']
    #allocation4 [shape = 's32[1]{0}', space=sflag, size = 0x4, scoped, tag = 'scoped memory for tpu_custom_call.1']
    #allocation5 [shape = 'u8[32768]{0}', space=vmem, size = 0x8000, scoped, tag = 'input window, operand 1, single buffered']
    #allocation6 [shape = 's32[1]{0}', space=sflag, size = 0x4, scoped, tag = 'scoped memory for tpu_custom_call.1']
    #allocation7 [shape = 'u8[16384]{0}', space=vmem, size = 0x4000, scoped, tag = 'input window, operand 2, single buffered']
    #allocation8 [shape = 'u8[16384]{0}', space=vmem, size = 0x4000, scoped, tag = 'input window, operand 3, single buffered']
    #allocation9 [shape = 's32[1]{0}', space=sflag, size = 0x4, scoped, tag = 'scoped memory for tpu_custom_call.1']
    #allocation10 [shape = 'u8[16384]{0}', space=vmem, size = 0x4000, scoped, tag = 'input window, operand 5, single buffered']
    #allocation11 [shape = 'u8[16384]{0}', space=vmem, size = 0x4000, scoped, tag = 'input window, operand 7, single buffered']
    #allocation12 [shape = 's32[1]{0}', space=sflag, size = 0x4, scoped, tag = 'scoped memory for tpu_custom_call.1']
    #allocation13 [shape = 'u8[4096]{0}', space=vmem, size = 0x1000, scoped, tag = 'output window, operand 0, single buffered']
    %14 = vsyncpa [#allocation3], 0
    %15 = vsyncpa [#allocation6], 0
    %16 = vsyncpa [#allocation9], 0
    %17 = vsyncpa [#allocation12], 0
    %18 = vsyncpa [#allocation4], 0
    // Predicated region
    $region2: #{tpu_custom_call.1} parent=1 // pred_check
      _
    $region3: #{tpu_custom_call.1} parent=1 // pred_check_branch
      %20 = sbr.rel (0) target = $region5
    $region4: #{tpu_custom_call.1} parent=1 // pred_region
      %s22 = ssub.s32 1024, 1024
      %23 = vsyncadd [#allocation3], %s22
      %s24 = sshll.u32 [#allocation2], 4
      %s25 = int_to_ptr.vmem [resolvable:$true] %s24
      %30 = dma.hbm_to_vmem [thread:$0]  %s0, 1024, %s25, [#allocation3], 128, 128, 8
    $region5: #{tpu_custom_call.1} parent=1 // pred_fallthru
      _
    // Predicated region
    $region6: #{tpu_custom_call.1} parent=1 // pred_check
      _
    $region7: #{tpu_custom_call.1} parent=1 // pred_check_branch
      %32 = sbr.rel (0) target = $region9
    $region8: #{tpu_custom_call.1} parent=1 // pred_region
      %s34 = ssub.s32 1024, 1024
      %35 = vsyncadd [#allocation6], %s34
      %s36 = sshll.u32 [#allocation5], 4
      %s37 = int_to_ptr.vmem [resolvable:$true] %s36
      %42 = dma.hbm_to_vmem [thread:$0]  %s1, 1024, %s37, [#allocation6], 128, 128, 8
    $region9: #{tpu_custom_call.1} parent=1 // pred_fallthru
      _
    // Predicated region
    $region10: #{tpu_custom_call.1} parent=1 // pred_check
      _
    $region11: #{tpu_custom_call.1} parent=1 // pred_check_branch
      %44 = sbr.rel (0) target = $region13
    $region12: #{tpu_custom_call.1} parent=1 // pred_region
      %s46 = ssub.s32 512, 512
      %47 = vsyncadd [#allocation6], %s46
      %s48 = sshll.u32 [#allocation7], 4
      %s49 = int_to_ptr.vmem [resolvable:$true] %s48
      %54 = dma.hbm_to_vmem [thread:$0]  %s2, 512, %s49, [#allocation6], 128, 128, 8
    $region13: #{tpu_custom_call.1} parent=1 // pred_fallthru
      _
    // Predicated region
    $region14: #{tpu_custom_call.1} parent=1 // pred_check
      _
    $region15: #{tpu_custom_call.1} parent=1 // pred_check_branch
      %56 = sbr.rel (0) target = $region17
    $region16: #{tpu_custom_call.1} parent=1 // pred_region
      %s58 = ssub.s32 512, 512
      %59 = vsyncadd [#allocation9], %s58
      %s60 = sshll.u32 [#allocation8], 4
      %s61 = int_to_ptr.vmem [resolvable:$true] %s60
      %66 = dma.hbm_to_vmem [thread:$0]  %s3, 512, %s61, [#allocation9], 128, 128, 8
    $region17: #{tpu_custom_call.1} parent=1 // pred_fallthru
      _
    // Predicated region
    $region18: #{tpu_custom_call.1} parent=1 // pred_check
      _
    $region19: #{tpu_custom_call.1} parent=1 // pred_check_branch
      %68 = sbr.rel (0) target = $region21
    $region20: #{tpu_custom_call.1} parent=1 // pred_region
      _
    $region21: #{tpu_custom_call.1} parent=1 // pred_fallthru
      _
    // Predicated region
    $region22: #{tpu_custom_call.1} parent=1 // pred_check
      _
    $region23: #{tpu_custom_call.1} parent=1 // pred_check_branch
      %70 = sbr.rel (0) target = $region25
    $region24: #{tpu_custom_call.1} parent=1 // pred_region
      %s72 = ssub.s32 512, 512
      %73 = vsyncadd [#allocation9], %s72
      %s74 = sshll.u32 [#allocation10], 4
      %s75 = int_to_ptr.vmem [resolvable:$true] %s74
      %80 = dma.hbm_to_vmem [thread:$0]  %s5, 512, %s75, [#allocation9], 128, 128, 8
    $region25: #{tpu_custom_call.1} parent=1 // pred_fallthru
      _
    // Predicated region
    $region26: #{tpu_custom_call.1} parent=1 // pred_check
      _
    $region27: #{tpu_custom_call.1} parent=1 // pred_check_branch
      %82 = sbr.rel (0) target = $region29
    $region28: #{tpu_custom_call.1} parent=1 // pred_region
      _
    $region29: #{tpu_custom_call.1} parent=1 // pred_fallthru
      _
    // Predicated region
    $region30: #{tpu_custom_call.1} parent=1 // pred_check
      _
    $region31: #{tpu_custom_call.1} parent=1 // pred_check_branch
      %84 = sbr.rel (0) target = $region33
    $region32: #{tpu_custom_call.1} parent=1 // pred_region
      %s86 = ssub.s32 512, 512
      %87 = vsyncadd [#allocation12], %s86
      %s88 = sshll.u32 [#allocation11], 4
      %s89 = int_to_ptr.vmem [resolvable:$true] %s88
      %94 = dma.hbm_to_vmem [thread:$0]  %s7, 512, %s89, [#allocation12], 128, 128, 8
    $region33: #{tpu_custom_call.1} parent=1 // pred_fallthru
      _
    // Predicated region
    $region34: #{tpu_custom_call.1} parent=1 // pred_check
      _
    $region35: #{tpu_custom_call.1} parent=1 // pred_check_branch
      %96 = sbr.rel (0) target = $region37
    $region36: #{tpu_custom_call.1} parent=1 // pred_region
      _
    $region37: #{tpu_custom_call.1} parent=1 // pred_fallthru
      _
    // Predicated region
    $region38: #{tpu_custom_call.1} parent=1 // pred_check
      _
    $region39: #{tpu_custom_call.1} parent=1 // pred_check_branch
      %98 = sbr.rel (0) target = $region41
    $region40: #{tpu_custom_call.1} parent=1 // pred_region
      %99 = dma.done [#allocation3], 1024
    $region41: #{tpu_custom_call.1} parent=1 // pred_fallthru
      _
    // Predicated region
    $region42: #{tpu_custom_call.1} parent=1 // pred_check
      _
    $region43: #{tpu_custom_call.1} parent=1 // pred_check_branch
      %101 = sbr.rel (0) target = $region45
    $region44: #{tpu_custom_call.1} parent=1 // pred_region
      %102 = dma.done [#allocation6], 1024
    $region45: #{tpu_custom_call.1} parent=1 // pred_fallthru
      _
    // Predicated region
    $region46: #{tpu_custom_call.1} parent=1 // pred_check
      _
    $region47: #{tpu_custom_call.1} parent=1 // pred_check_branch
      %104 = sbr.rel (0) target = $region49
    $region48: #{tpu_custom_call.1} parent=1 // pred_region
      %105 = dma.done [#allocation6], 512
    $region49: #{tpu_custom_call.1} parent=1 // pred_fallthru
      _
    // Predicated region
    $region50: #{tpu_custom_call.1} parent=1 // pred_check
      _
    $region51: #{tpu_custom_call.1} parent=1 // pred_check_branch
      %107 = sbr.rel (0) target = $region53
    $region52: #{tpu_custom_call.1} parent=1 // pred_region
      %108 = dma.done [#allocation9], 512
    $region53: #{tpu_custom_call.1} parent=1 // pred_fallthru
      _
    // Predicated region
    $region54: #{tpu_custom_call.1} parent=1 // pred_check
      _
    $region55: #{tpu_custom_call.1} parent=1 // pred_check_branch
      %110 = sbr.rel (0) target = $region57
    $region56: #{tpu_custom_call.1} parent=1 // pred_region
      %111 = dma.done [#allocation9], 512
    $region57: #{tpu_custom_call.1} parent=1 // pred_fallthru
      _
    // Predicated region
    $region58: #{tpu_custom_call.1} parent=1 // pred_check
      _
    $region59: #{tpu_custom_call.1} parent=1 // pred_check_branch
      %113 = sbr.rel (0) target = $region61
    $region60: #{tpu_custom_call.1} parent=1 // pred_region
      %114 = dma.done [#allocation12], 512
    $region61: #{tpu_custom_call.1} parent=1 // pred_fallthru
      _
    %v115 = vld [vmem:[#allocation2] sm:$0xff]
    %v116 = vld [vmem:[#allocation2 + $0x8] sm:$0xff]
    %v117 = vld [vmem:[#allocation2 + $0x10] sm:$0xff]
    %v118 = vld [vmem:[#allocation2 + $0x18] sm:$0xff]
    %v119 = vld [vmem:[#allocation2 + $0x20] sm:$0xff]
    %v120 = vld [vmem:[#allocation2 + $0x28] sm:$0xff]
    %v121 = vld [vmem:[#allocation2 + $0x30] sm:$0xff]
    %v122 = vld [vmem:[#allocation2 + $0x38] sm:$0xff]
    %vm123 = vcmask 261120
    %v124 = vsel %vm123, %v115, 0.0
    %v125 = vrot.slane %v124, 4
    %v126 = vadd.f32 %v124, %v125
    %v127 = vrot.slane %v126, 2
    %v128 = vadd.f32 %v126, %v127
    %v129 = vrot.slane %v128, 1
    %v130 = vadd.f32 %v128, %v129
    %v131 = vsel %vm123, %v116, 0.0
    %v132 = vrot.slane %v131, 4
    %v133 = vadd.f32 %v131, %v132
    %v134 = vrot.slane %v133, 2
    %v135 = vadd.f32 %v133, %v134
    %v136 = vrot.slane %v135, 1
    %v137 = vadd.f32 %v135, %v136
    %v138 = vsel %vm123, %v117, 0.0
    %v139 = vrot.slane %v138, 4
    %v140 = vadd.f32 %v138, %v139
    %v141 = vrot.slane %v140, 2
    %v142 = vadd.f32 %v140, %v141
    %v143 = vrot.slane %v142, 1
    %v144 = vadd.f32 %v142, %v143
    %v145 = vsel %vm123, %v118, 0.0
    %v146 = vrot.slane %v145, 4
    %v147 = vadd.f32 %v145, %v146
    %v148 = vrot.slane %v147, 2
    %v149 = vadd.f32 %v147, %v148
    %v150 = vrot.slane %v149, 1
    %v151 = vadd.f32 %v149, %v150
    %v152 = vsel %vm123, %v119, 0.0
    %v153 = vrot.slane %v152, 4
    %v154 = vadd.f32 %v152, %v153
    %v155 = vrot.slane %v154, 2
    %v156 = vadd.f32 %v154, %v155
    %v157 = vrot.slane %v156, 1
    %v158 = vadd.f32 %v156, %v157
    %v159 = vsel %vm123, %v120, 0.0
    %v160 = vrot.slane %v159, 4
    %v161 = vadd.f32 %v159, %v160
    %v162 = vrot.slane %v161, 2
    %v163 = vadd.f32 %v161, %v162
    %v164 = vrot.slane %v163, 1
    %v165 = vadd.f32 %v163, %v164
    %v166 = vsel %vm123, %v121, 0.0
    %v167 = vrot.slane %v166, 4
    %v168 = vadd.f32 %v166, %v167
    %v169 = vrot.slane %v168, 2
    %v170 = vadd.f32 %v168, %v169
    %v171 = vrot.slane %v170, 1
    %v172 = vadd.f32 %v170, %v171
    %v173 = vsel %vm123, %v122, 0.0
    %v174 = vrot.slane %v173, 4
    %v175 = vadd.f32 %v173, %v174
    %v176 = vrot.slane %v175, 2
    %v177 = vadd.f32 %v175, %v176
    %v178 = vrot.slane %v177, 1
    %v179 = vadd.f32 %v177, %v178
    %v180 = vld [vmem:[#allocation5] sm:$0xff]
    %v181 = vld [vmem:[#allocation5 + $0x8] sm:$0xff]
    %v182 = vld [vmem:[#allocation5 + $0x10] sm:$0xff]
    %v183 = vld [vmem:[#allocation5 + $0x18] sm:$0xff]
    %v184 = vld [vmem:[#allocation5 + $0x20] sm:$0xff]
    %v185 = vld [vmem:[#allocation5 + $0x28] sm:$0xff]
    %v186 = vld [vmem:[#allocation5 + $0x30] sm:$0xff]
    %v187 = vld [vmem:[#allocation5 + $0x38] sm:$0xff]
    %v188 = vsel %vm123, %v180, 0.0
    %v189 = vrot.slane %v188, 4
    %v190 = vadd.f32 %v188, %v189
    %v191 = vrot.slane %v190, 2
    %v192 = vadd.f32 %v190, %v191
    %v193 = vrot.slane %v192, 1
    %v194 = vadd.f32 %v192, %v193
    %v195 = vsel %vm123, %v181, 0.0
    %v196 = vrot.slane %v195, 4
    %v197 = vadd.f32 %v195, %v196
    %v198 = vrot.slane %v197, 2
    %v199 = vadd.f32 %v197, %v198
    %v200 = vrot.slane %v199, 1
    %v201 = vadd.f32 %v199, %v200
    %v202 = vsel %vm123, %v182, 0.0
    %v203 = vrot.slane %v202, 4
    %v204 = vadd.f32 %v202, %v203
    %v205 = vrot.slane %v204, 2
    %v206 = vadd.f32 %v204, %v205
    %v207 = vrot.slane %v206, 1
    %v208 = vadd.f32 %v206, %v207
    %v209 = vsel %vm123, %v183, 0.0
    %v210 = vrot.slane %v209, 4
    %v211 = vadd.f32 %v209, %v210
    %v212 = vrot.slane %v211, 2
    %v213 = vadd.f32 %v211, %v212
    %v214 = vrot.slane %v213, 1
    %v215 = vadd.f32 %v213, %v214
    %v216 = vsel %vm123, %v184, 0.0
    %v217 = vrot.slane %v216, 4
    %v218 = vadd.f32 %v216, %v217
    %v219 = vrot.slane %v218, 2
    %v220 = vadd.f32 %v218, %v219
    %v221 = vrot.slane %v220, 1
    %v222 = vadd.f32 %v220, %v221
    %v223 = vsel %vm123, %v185, 0.0
    %v224 = vrot.slane %v223, 4
    %v225 = vadd.f32 %v223, %v224
    %v226 = vrot.slane %v225, 2
    %v227 = vadd.f32 %v225, %v226
    %v228 = vrot.slane %v227, 1
    %v229 = vadd.f32 %v227, %v228
    %v230 = vsel %vm123, %v186, 0.0
    %v231 = vrot.slane %v230, 4
    %v232 = vadd.f32 %v230, %v231
    %v233 = vrot.slane %v232, 2
    %v234 = vadd.f32 %v232, %v233
    %v235 = vrot.slane %v234, 1
    %v236 = vadd.f32 %v234, %v235
    %v237 = vsel %vm123, %v187, 0.0
    %v238 = vrot.slane %v237, 4
    %v239 = vadd.f32 %v237, %v238
    %v240 = vrot.slane %v239, 2
    %v241 = vadd.f32 %v239, %v240
    %v242 = vrot.slane %v241, 1
    %v243 = vadd.f32 %v241, %v242
    %v244 = vld [vmem:[#allocation7] sm:$0xff]
    %v245 = vld [vmem:[#allocation7 + $0x8] sm:$0xff]
    %v246 = vld [vmem:[#allocation7 + $0x10] sm:$0xff]
    %v247 = vld [vmem:[#allocation7 + $0x18] sm:$0xff]
    %v248 = vld [vmem:[#allocation8] sm:$0xff]
    %v249 = vld [vmem:[#allocation8 + $0x8] sm:$0xff]
    %v250 = vld [vmem:[#allocation8 + $0x10] sm:$0xff]
    %v251 = vld [vmem:[#allocation8 + $0x18] sm:$0xff]
    %vm260 = vcmask 1041409
    %v261 = vsel %vm260, %v201, %v194
    %vm262 = vcmask 1042434
    %v263 = vsel %vm262, %v208, %v261
    %vm264 = vcmask 1043459
    %v265 = vsel %vm264, %v215, %v263
    %vm266 = vcmask 1044484
    %v267 = vsel %vm266, %v222, %v265
    %vm268 = vcmask 1045509
    %v269 = vsel %vm268, %v229, %v267
    %vm270 = vcmask 1046534
    %v271 = vsel %vm270, %v236, %v269
    %vm272 = vcmask 1047559
    %v273 = vsel %vm272, %v243, %v271
    %v274 = vsel %vm123, %v273, 0
    %276 = vmatprep.subr.mxu0 0.0
    %277 = vmatpush1.msra.mxu0 %v248
    %278 = vmatprep.subr.mxu0 0.0
    %279 = vmatpush1.msra.mxu0 %v249
    %280 = vmatprep.subr.mxu0 0.0
    %281 = vmatpush1.msra.mxu0 %v250
    %282 = vmatprep.subr.mxu0 0.0
    %283 = vmatpush1.msra.mxu0 %v251
    %284 = vmatprep.subr.mxu0 0.0
    %285 = vmatpush1.msra.mxu0 0.0
    %286 = vmatprep.subr.mxu0 0.0
    %287 = vmatpush1.msra.mxu0 0.0
    %288 = vmatprep.subr.mxu0 0.0
    %289 = vmatpush1.msra.mxu0 0.0
    %290 = vmatprep.subr.mxu0 0.0
    %291 = vmatpush1.msra.mxu0 0.0
    %292 = vmatprep.subr.mxu0 0.0
    %293 = vmatpush1.msra.mxu0 0.0
    %294 = vmatprep.subr.mxu0 0.0
    %295 = vmatpush1.msra.mxu0 0.0
    %296 = vmatprep.subr.mxu0 0.0
    %297 = vmatpush1.msra.mxu0 0.0
    %298 = vmatprep.subr.mxu0 0.0
    %299 = vmatpush1.msra.mxu0 0.0
    %300 = vmatprep.subr.mxu0 0.0
    %301 = vmatpush1.msra.mxu0 0.0
    %302 = vmatprep.subr.mxu0 0.0
    %303 = vmatpush1.msra.mxu0 0.0
    %304 = vmatprep.subr.mxu0 0.0
    %305 = vmatpush1.msra.mxu0 0.0
    %306 = vmatprep.subr.mxu0 0.0
    %307 = vmatpush1.msra.mxu0 0.0
    %308 = vmatprep.subr.mxu0 0.0
    %309 = vmatpush1.msra.mxu0 0.0
    %310 = vmatprep.subr.mxu0 0.0
    %311 = vmatpush1.msra.mxu0 0.0
    %312 = vmatprep.subr.mxu0 0.0
    %313 = vmatpush1.msra.mxu0 0.0
    %314 = vmatprep.subr.mxu0 0.0
    %315 = vmatpush1.msra.mxu0 0.0
    %316 = vmatprep.subr.mxu0 0.0
    %317 = vmatpush1.msra.mxu0 0.0
    %318 = vmatprep.subr.mxu0 0.0
    %319 = vmatpush1.msra.mxu0 0.0
    %320 = vmatprep.subr.mxu0 0.0
    %321 = vmatpush1.msra.mxu0 0.0
    %322 = vmatprep.subr.mxu0 0.0
    %323 = vmatpush1.msra.mxu0 0.0
    %324 = vmatprep.subr.mxu0 0.0
    %325 = vmatpush1.msra.mxu0 0.0
    %326 = vmatprep.subr.mxu0 0.0
    %327 = vmatpush1.msra.mxu0 0.0
    %328 = vmatprep.subr.mxu0 0.0
    %329 = vmatpush1.msra.mxu0 0.0
    %330 = vmatprep.subr.mxu0 0.0
    %331 = vmatpush1.msra.mxu0 0.0
    %332 = vmatprep.subr.mxu0 0.0
    %333 = vmatpush1.msra.mxu0 0.0
    %334 = vmatprep.subr.mxu0 0.0
    %335 = vmatpush1.msra.mxu0 0.0
    %336 = vmatprep.subr.mxu0 0.0
    %337 = vmatpush1.msra.mxu0 0.0
    %338 = vmatprep.subr.mxu0 0.0
    %339 = vmatpush1.msra.mxu0 0.0
    %340 = vmatprep.mubr.f32.mxu0 0.0
    %341 = vmatmul.mubr.f32.gmra.mrb[0].mxu0 %v274
    %v342 = vpop.f32.mrb[0].mxu0
    %v343 = vadd.f32 0.0, %v342
    %v344 = vpop.f32.mrb[0].mxu0
    %345 = vdwg.mxu0
    %v354 = vsel %vm260, %v137, %v130
    %v355 = vsel %vm262, %v144, %v354
    %v356 = vsel %vm264, %v151, %v355
    %v357 = vsel %vm266, %v158, %v356
    %v358 = vsel %vm268, %v165, %v357
    %v359 = vsel %vm270, %v172, %v358
    %v360 = vsel %vm272, %v179, %v359
    %v361 = vsel %vm123, %v360, 0
    %363 = vmatprep.subr.mxu0 0.0
    %364 = vmatpush1.msra.mxu0 %v244
    %365 = vmatprep.subr.mxu0 0.0
    %366 = vmatpush1.msra.mxu0 %v245
    %367 = vmatprep.subr.mxu0 0.0
    %368 = vmatpush1.msra.mxu0 %v246
    %369 = vmatprep.subr.mxu0 0.0
    %370 = vmatpush1.msra.mxu0 %v247
    %371 = vmatprep.subr.mxu0 0.0
    %372 = vmatpush1.msra.mxu0 0.0
    %373 = vmatprep.subr.mxu0 0.0
    %374 = vmatpush1.msra.mxu0 0.0
    %375 = vmatprep.subr.mxu0 0.0
    %376 = vmatpush1.msra.mxu0 0.0
    %377 = vmatprep.subr.mxu0 0.0
    %378 = vmatpush1.msra.mxu0 0.0
    %379 = vmatprep.subr.mxu0 0.0
    %380 = vmatpush1.msra.mxu0 0.0
    %381 = vmatprep.subr.mxu0 0.0
    %382 = vmatpush1.msra.mxu0 0.0
    %383 = vmatprep.subr.mxu0 0.0
    %384 = vmatpush1.msra.mxu0 0.0
    %385 = vmatprep.subr.mxu0 0.0
    %386 = vmatpush1.msra.mxu0 0.0
    %387 = vmatprep.subr.mxu0 0.0
    %388 = vmatpush1.msra.mxu0 0.0
    %389 = vmatprep.subr.mxu0 0.0
    %390 = vmatpush1.msra.mxu0 0.0
    %391 = vmatprep.subr.mxu0 0.0
    %392 = vmatpush1.msra.mxu0 0.0
    %393 = vmatprep.subr.mxu0 0.0
    %394 = vmatpush1.msra.mxu0 0.0
    %395 = vmatprep.subr.mxu0 0.0
    %396 = vmatpush1.msra.mxu0 0.0
    %397 = vmatprep.subr.mxu0 0.0
    %398 = vmatpush1.msra.mxu0 0.0
    %399 = vmatprep.subr.mxu0 0.0
    %400 = vmatpush1.msra.mxu0 0.0
    %401 = vmatprep.subr.mxu0 0.0
    %402 = vmatpush1.msra.mxu0 0.0
    %403 = vmatprep.subr.mxu0 0.0
    %404 = vmatpush1.msra.mxu0 0.0
    %405 = vmatprep.subr.mxu0 0.0
    %406 = vmatpush1.msra.mxu0 0.0
    %407 = vmatprep.subr.mxu0 0.0
    %408 = vmatpush1.msra.mxu0 0.0
    %409 = vmatprep.subr.mxu0 0.0
    %410 = vmatpush1.msra.mxu0 0.0
    %411 = vmatprep.subr.mxu0 0.0
    %412 = vmatpush1.msra.mxu0 0.0
    %413 = vmatprep.subr.mxu0 0.0
    %414 = vmatpush1.msra.mxu0 0.0
    %415 = vmatprep.subr.mxu0 0.0
    %416 = vmatpush1.msra.mxu0 0.0
    %417 = vmatprep.subr.mxu0 0.0
    %418 = vmatpush1.msra.mxu0 0.0
    %419 = vmatprep.subr.mxu0 0.0
    %420 = vmatpush1.msra.mxu0 0.0
    %421 = vmatprep.subr.mxu0 0.0
    %422 = vmatpush1.msra.mxu0 0.0
    %423 = vmatprep.subr.mxu0 0.0
    %424 = vmatpush1.msra.mxu0 0.0
    %425 = vmatprep.subr.mxu0 0.0
    %426 = vmatpush1.msra.mxu0 0.0
    %427 = vmatprep.mubr.f32.mxu0 0.0
    %428 = vmatmul.mubr.f32.gmra.mrb[0].mxu0 %v361
    %v429 = vpop.f32.mrb[0].mxu0
    %v430 = vadd.f32 %v343, %v429
    %v431 = vpop.f32.mrb[0].mxu0
    %432 = vdwg.mxu0
    %v433 = vld [vmem:[%s4] sm:$0x1]
    %v435 = vlaneseq
    %v436 = vshrl.u32 %v435, 7
    %v437 = vsub.s32 0, %v436
    %v438 = vrot.slane %v433, %v437
    %v440 = vadd.f32 %v430, %v438
    %v441 = vmax.f32 %v440, 0.0
    %v442 = vld [vmem:[#allocation10] sm:$0xff]
    %v443 = vld [vmem:[#allocation10 + $0x8] sm:$0xff]
    %v444 = vld [vmem:[#allocation10 + $0x10] sm:$0xff]
    %v445 = vld [vmem:[#allocation10 + $0x18] sm:$0xff]
    %v446 = vld [vmem:[%s6] sm:$0x1]
    %v448 = vlaneseq
    %v449 = vshrl.u32 %v448, 7
    %v450 = vsub.s32 0, %v449
    %v451 = vrot.slane %v446, %v450
    %v454 = vsel %vm123, %v441, 0
    %456 = vmatprep.subr.mxu0 0.0
    %457 = vmatpush1.msra.mxu0 %v442
    %458 = vmatprep.subr.mxu0 0.0
    %459 = vmatpush1.msra.mxu0 %v443
    %460 = vmatprep.subr.mxu0 0.0
    %461 = vmatpush1.msra.mxu0 %v444
    %462 = vmatprep.subr.mxu0 0.0
    %463 = vmatpush1.msra.mxu0 %v445
    %464 = vmatprep.subr.mxu0 0.0
    %465 = vmatpush1.msra.mxu0 0.0
    %466 = vmatprep.subr.mxu0 0.0
    %467 = vmatpush1.msra.mxu0 0.0
    %468 = vmatprep.subr.mxu0 0.0
    %469 = vmatpush1.msra.mxu0 0.0
    %470 = vmatprep.subr.mxu0 0.0
    %471 = vmatpush1.msra.mxu0 0.0
    %472 = vmatprep.subr.mxu0 0.0
    %473 = vmatpush1.msra.mxu0 0.0
    %474 = vmatprep.subr.mxu0 0.0
    %475 = vmatpush1.msra.mxu0 0.0
    %476 = vmatprep.subr.mxu0 0.0
    %477 = vmatpush1.msra.mxu0 0.0
    %478 = vmatprep.subr.mxu0 0.0
    %479 = vmatpush1.msra.mxu0 0.0
    %480 = vmatprep.subr.mxu0 0.0
    %481 = vmatpush1.msra.mxu0 0.0
    %482 = vmatprep.subr.mxu0 0.0
    %483 = vmatpush1.msra.mxu0 0.0
    %484 = vmatprep.subr.mxu0 0.0
    %485 = vmatpush1.msra.mxu0 0.0
    %486 = vmatprep.subr.mxu0 0.0
    %487 = vmatpush1.msra.mxu0 0.0
    %488 = vmatprep.subr.mxu0 0.0
    %489 = vmatpush1.msra.mxu0 0.0
    %490 = vmatprep.subr.mxu0 0.0
    %491 = vmatpush1.msra.mxu0 0.0
    %492 = vmatprep.subr.mxu0 0.0
    %493 = vmatpush1.msra.mxu0 0.0
    %494 = vmatprep.subr.mxu0 0.0
    %495 = vmatpush1.msra.mxu0 0.0
    %496 = vmatprep.subr.mxu0 0.0
    %497 = vmatpush1.msra.mxu0 0.0
    %498 = vmatprep.subr.mxu0 0.0
    %499 = vmatpush1.msra.mxu0 0.0
    %500 = vmatprep.subr.mxu0 0.0
    %501 = vmatpush1.msra.mxu0 0.0
    %502 = vmatprep.subr.mxu0 0.0
    %503 = vmatpush1.msra.mxu0 0.0
    %504 = vmatprep.subr.mxu0 0.0
    %505 = vmatpush1.msra.mxu0 0.0
    %506 = vmatprep.subr.mxu0 0.0
    %507 = vmatpush1.msra.mxu0 0.0
    %508 = vmatprep.subr.mxu0 0.0
    %509 = vmatpush1.msra.mxu0 0.0
    %510 = vmatprep.subr.mxu0 0.0
    %511 = vmatpush1.msra.mxu0 0.0
    %512 = vmatprep.subr.mxu0 0.0
    %513 = vmatpush1.msra.mxu0 0.0
    %514 = vmatprep.subr.mxu0 0.0
    %515 = vmatpush1.msra.mxu0 0.0
    %516 = vmatprep.subr.mxu0 0.0
    %517 = vmatpush1.msra.mxu0 0.0
    %518 = vmatprep.subr.mxu0 0.0
    %519 = vmatpush1.msra.mxu0 0.0
    %520 = vmatprep.mubr.f32.mxu0 0.0
    %521 = vmatmul.mubr.f32.gmra.mrb[0].mxu0 %v454
    %v522 = vpop.f32.mrb[0].mxu0
    %v523 = vadd.f32 %v451, %v522
    %v524 = vpop.f32.mrb[0].mxu0
    %525 = vdwg.mxu0
    %v526 = vmax.f32 %v523, 0.0
    %v527 = vld [vmem:[#allocation11] sm:$0xff]
    %v528 = vld [vmem:[#allocation11 + $0x8] sm:$0xff]
    %v529 = vld [vmem:[#allocation11 + $0x10] sm:$0xff]
    %v530 = vld [vmem:[#allocation11 + $0x18] sm:$0xff]
    %v531 = vld [vmem:[%s8] sm:$0x1]
    %v533 = vlaneseq
    %v534 = vshrl.u32 %v533, 7
    %v535 = vsub.s32 0, %v534
    %v536 = vrot.slane %v531, %v535
    %v539 = vsel %vm123, %v526, 0
    %541 = vmatprep.subr.mxu0 0.0
    %542 = vmatpush1.msra.mxu0 %v527
    %543 = vmatprep.subr.mxu0 0.0
    %544 = vmatpush1.msra.mxu0 %v528
    %545 = vmatprep.subr.mxu0 0.0
    %546 = vmatpush1.msra.mxu0 %v529
    %547 = vmatprep.subr.mxu0 0.0
    %548 = vmatpush1.msra.mxu0 %v530
    %549 = vmatprep.subr.mxu0 0.0
    %550 = vmatpush1.msra.mxu0 0.0
    %551 = vmatprep.subr.mxu0 0.0
    %552 = vmatpush1.msra.mxu0 0.0
    %553 = vmatprep.subr.mxu0 0.0
    %554 = vmatpush1.msra.mxu0 0.0
    %555 = vmatprep.subr.mxu0 0.0
    %556 = vmatpush1.msra.mxu0 0.0
    %557 = vmatprep.subr.mxu0 0.0
    %558 = vmatpush1.msra.mxu0 0.0
    %559 = vmatprep.subr.mxu0 0.0
    %560 = vmatpush1.msra.mxu0 0.0
    %561 = vmatprep.subr.mxu0 0.0
    %562 = vmatpush1.msra.mxu0 0.0
    %563 = vmatprep.subr.mxu0 0.0
    %564 = vmatpush1.msra.mxu0 0.0
    %565 = vmatprep.subr.mxu0 0.0
    %566 = vmatpush1.msra.mxu0 0.0
    %567 = vmatprep.subr.mxu0 0.0
    %568 = vmatpush1.msra.mxu0 0.0
    %569 = vmatprep.subr.mxu0 0.0
    %570 = vmatpush1.msra.mxu0 0.0
    %571 = vmatprep.subr.mxu0 0.0
    %572 = vmatpush1.msra.mxu0 0.0
    %573 = vmatprep.subr.mxu0 0.0
    %574 = vmatpush1.msra.mxu0 0.0
    %575 = vmatprep.subr.mxu0 0.0
    %576 = vmatpush1.msra.mxu0 0.0
    %577 = vmatprep.subr.mxu0 0.0
    %578 = vmatpush1.msra.mxu0 0.0
    %579 = vmatprep.subr.mxu0 0.0
    %580 = vmatpush1.msra.mxu0 0.0
    %581 = vmatprep.subr.mxu0 0.0
    %582 = vmatpush1.msra.mxu0 0.0
    %583 = vmatprep.subr.mxu0 0.0
    %584 = vmatpush1.msra.mxu0 0.0
    %585 = vmatprep.subr.mxu0 0.0
    %586 = vmatpush1.msra.mxu0 0.0
    %587 = vmatprep.subr.mxu0 0.0
    %588 = vmatpush1.msra.mxu0 0.0
    %589 = vmatprep.subr.mxu0 0.0
    %590 = vmatpush1.msra.mxu0 0.0
    %591 = vmatprep.subr.mxu0 0.0
    %592 = vmatpush1.msra.mxu0 0.0
    %593 = vmatprep.subr.mxu0 0.0
    %594 = vmatpush1.msra.mxu0 0.0
    %595 = vmatprep.subr.mxu0 0.0
    %596 = vmatpush1.msra.mxu0 0.0
    %597 = vmatprep.subr.mxu0 0.0
    %598 = vmatpush1.msra.mxu0 0.0
    %599 = vmatprep.subr.mxu0 0.0
    %600 = vmatpush1.msra.mxu0 0.0
    %601 = vmatprep.subr.mxu0 0.0
    %602 = vmatpush1.msra.mxu0 0.0
    %603 = vmatprep.subr.mxu0 0.0
    %604 = vmatpush1.msra.mxu0 0.0
    %605 = vmatprep.mubr.f32.mxu0 0.0
    %606 = vmatmul.mubr.f32.gmra.mrb[0].mxu0 %v539
    %v607 = vpop.f32.mrb[0].mxu0
    %v608 = vadd.f32 %v536, %v607
    %v609 = vpop.f32.mrb[0].mxu0
    %610 = vdwg.mxu0
    %611 = vst [vmem:[#allocation13] sm:$0xff] %v608
    // Predicated region
    $region62: #{tpu_custom_call.1} parent=1 // pred_check
      _
    $region63: #{tpu_custom_call.1} parent=1 // pred_check_branch
      %613 = sbr.rel (0) target = $region65
    $region64: #{tpu_custom_call.1} parent=1 // pred_region
      %s615 = ssub.s32 128, 128
      %616 = vsyncadd [#allocation4], %s615
      %s618 = sshll.u32 [#allocation13], 4
      %s619 = int_to_ptr.vmem [resolvable:$true] %s618
      %621 = dma.vmem_to_hbm [thread:$0]  %s619, 128, %s9, [#allocation4]
    $region65: #{tpu_custom_call.1} parent=1 // pred_fallthru
      _
    // Predicated region
    $region66: #{tpu_custom_call.1} parent=1 // pred_check
      _
    $region67: #{tpu_custom_call.1} parent=1 // pred_check_branch
      %623 = sbr.rel (0) target = $region69
    $region68: #{tpu_custom_call.1} parent=1 // pred_region
      %624 = dma.done [#allocation4], 128
    $region69: #{tpu_custom_call.1} parent=1 // pred_fallthru
      _
    %625 = vsyncpa [#allocation3], 1
    %626 = vsyncpa [#allocation6], 1
    %627 = vsyncpa [#allocation9], 1
    %628 = vsyncpa [#allocation12], 1
    %629 = vsyncpa [#allocation4], 1

</llo_original>
